<compile_context>
chip_gen: v7x
topology: tpu7x:2x2x1
jax: 0.10.0
libtpu: 0.0.40
codegen_flags: <defaults>
</compile_context>

<pallas_src>
import math

import jax
import jax.numpy as jnp
from jax.experimental import pallas as pl
from jax.experimental.pallas import tpu as pltpu


def _copy_kernel(x_ref, o_ref):
    # Straight lane-dense tile copy; identical block shapes on both sides.
    o_ref[...] = x_ref[...]


def _sublane_granularity(dtype) -> int:
    """Packed sublane granularity per dtype (f32: 8, bf16: 16, int8/fp8: 32)."""
    itemsize = jnp.dtype(dtype).itemsize
    if itemsize >= 4:
        return 8
    if itemsize == 2:
        return 16
    return 32


def _tile_byte_cap() -> int:
    """Per-tile byte cap so the double-buffered (2 in + 2 out) working set
    stays comfortably inside scoped VMEM on every generation."""
    try:
        kind = jax.devices()[0].device_kind.lower()
    except Exception:
        kind = ""
    if "v5" in kind:
        return 2 * 1024 * 1024    # v5e: 16 MiB default scoped VMEM -> 8 MiB WS + headroom
    if "v6" in kind:
        return 8 * 1024 * 1024    # v6e: 128 MiB physical -> 32 MiB WS
    return 4 * 1024 * 1024        # v7x (64 MiB physical / TC) and unknown: conservative


def _pick_lane_width(total: int, sub: int):
    """Largest lane width L in {1024,512,256,128} dividing `total`, preferring
    one whose row count is also sublane-aligned."""
    best = None
    for lane in (1024, 512, 256, 128):
        if total % lane != 0:
            continue
        if best is None:
            best = lane
        if (total // lane) % sub == 0:
            return lane
    return best


def _pick_row_tile(rows: int, cols: int, itemsize: int, sub: int, cap_bytes: int) -> int:
    """Largest multiple of `sub` that divides `rows` and keeps a single tile
    under `cap_bytes`.  Never silently ignores the cap: if even `sub` rows
    exceed it, `sub` is the smallest legal tile and the explicit
    vmem_limit_bytes is sized to match."""
    if rows % sub != 0:
        return rows                                  # full-array block along rows
    row_bytes = cols * itemsize
    max_rows = (cap_bytes // row_bytes) // sub * sub
    if max_rows < sub:
        return sub                                   # smallest legal tile
    t = min(rows, max_rows)
    t = (t // sub) * sub
    while t > sub and rows % t != 0:
        t -= sub
    return t


def _unsqueeze_pallas(x: jax.Array) -> jax.Array:
    orig_shape = x.shape
    out_shape = orig_shape[:1] + (1,) + orig_shape[1:]
    total = math.prod(orig_shape)
    itemsize = jnp.dtype(x.dtype).itemsize
    sub = _sublane_granularity(x.dtype)
    cap = _tile_byte_cap()

    lane = _pick_lane_width(total, sub)
    if lane is None:
        # TODO(synk): pad/mask path for element counts not divisible by 128;
        # small inputs fall back to a single full-array block (always legal).
        rows = max(1, total // orig_shape[-1])
        cols = orig_shape[-1]
        x2d = x.reshape(rows, cols)
        out2d = pl.pallas_call(
            _copy_kernel,
            out_shape=jax.ShapeDtypeStruct((rows, cols), x.dtype),
            in_specs=[pl.BlockSpec((rows, cols), lambda: (0, 0))],
            out_specs=pl.BlockSpec((rows, cols), lambda: (0, 0)),
            input_output_aliases={0: 0},
        )(x2d)
        return out2d.reshape(out_shape)

    rows, cols = total // lane, lane
    x2d = x.reshape(rows, cols)                      # metadata-only (contiguous)

    tile_rows = _pick_row_tile(rows, cols, itemsize, sub, cap)
    grid = (rows // tile_rows,)
    tile_bytes = tile_rows * cols * itemsize
    # Scoped-VMEM budget: double-buffered input + output tiles, plus headroom,
    # capped at 64 MiB so it never exceeds v7x's physical VMEM per TC.
    vmem_limit = min(64 * 1024 * 1024, max(4 * tile_bytes + (2 << 20), 16 << 20))

    out2d = pl.pallas_call(
        _copy_kernel,
        out_shape=jax.ShapeDtypeStruct((rows, cols), x.dtype),
        grid_spec=pltpu.PrefetchScalarGridSpec(
            num_scalar_prefetch=0,
            grid=grid,
            in_specs=[pl.BlockSpec((tile_rows, cols), lambda i: (i, 0))],
            out_specs=pl.BlockSpec((tile_rows, cols), lambda i: (i, 0)),
        ),
        compiler_params=pltpu.CompilerParams(
            dimension_semantics=("parallel",),
            vmem_limit_bytes=vmem_limit,
        ),
        input_output_aliases={0: 0},
    )(x2d)

    # Metadata-only reshape inserting the size-1 axis at dim 1 — identical to
    # torch.unsqueeze(x, 1) for a contiguous tensor.
    return out2d.reshape(out_shape)


def unsqueezer(x: jax.Array, *, force_pallas: bool = False) -> jax.Array:
    """Equivalent of torch.unsqueeze(x, 1).

    Default path is metadata-only (jnp.expand_dims) — the correct production
    answer: zero HBM traffic.  `force_pallas=True` routes through the Pallas
    copy kernel for when an explicit kernel boundary is required.
    """
    if not force_pallas:
        return jnp.expand_dims(x, 1)
    return _unsqueeze_pallas(x)


if __name__ == "__main__":
    key = jax.random.PRNGKey(0)
    # Small NCHW input consistent with the module's forward.
    x = jax.random.normal(key, (2, 4, 16, 16), dtype=jnp.float32)

    # Preferred (metadata-only) path.
    y_fast = unsqueezer(x)
    # Pallas kernel path, exercised once.
    y = unsqueezer(x, force_pallas=True)
    jax.block_until_ready(y)

    # Sanity checks against torch.unsqueeze(x, 1) semantics.
    y_ref = jnp.expand_dims(x, 1)
    assert y.shape == (2, 1, 4, 16, 16), y.shape
    assert y.dtype == x.dtype
    assert bool(jnp.array_equal(y, y_ref))
    assert bool(jnp.array_equal(y_fast, y_ref))

    print("KERNEL_OK")
</pallas_src>

<mosaic_0001>
module attributes {stable_mosaic.version = 11 : i64} {
  func.func @_copy_kernel(%arg0: i32, %arg1: memref<8x256xf32, #tpu.memory_space<vmem>>, %arg2: memref<8x256xf32, #tpu.memory_space<vmem>>) attributes {dimension_semantics = [#tpu.dimension_semantics<parallel>], iteration_bounds = array<i64: 1>, scalar_prefetch = 0 : i64, scratch_operands = 0 : i64, tpu.core_type = #tpu.core_type<tc>, window_params = [{transform_indices = @transform_0, window_bounds = array<i64: 8, 256>}, {transform_indices = @transform_1, window_bounds = array<i64: 8, 256>}]} {
    %c0 = arith.constant 0 : index
    %c0_0 = arith.constant 0 : index
    %0 = vector.load %arg1[%c0, %c0_0] : memref<8x256xf32, #tpu.memory_space<vmem>>, vector<8x256xf32>
    %c0_1 = arith.constant 0 : index
    %c0_2 = arith.constant 0 : index
    %1 = vector.load %arg2[%c0_1, %c0_2] : memref<8x256xf32, #tpu.memory_space<vmem>>, vector<8x256xf32>
    tpu.vector_store %arg2[%c0_1, %c0_2], %0 {strides = array<i32>} : memref<8x256xf32, #tpu.memory_space<vmem>>, vector<8x256xf32>,
    return
  }
  func.func @transform_0(%arg0: i32) -> (i32, i32) {
    %c0_i32 = arith.constant 0 : i32
    %c0_i32_0 = arith.constant 0 : i32
    return %arg0, %c0_i32 : i32, i32
  }
  func.func @transform_1(%arg0: i32) -> (i32, i32) {
    %c0_i32 = arith.constant 0 : i32
    %c0_i32_0 = arith.constant 0 : i32
    return %arg0, %c0_i32 : i32, i32
  }
}

</mosaic_0001>

<llo_original>
// kernel: tpu_custom_call.1
$region0: #{tpu_custom_call.1}
  #allocation0 [shape = 'u32[]', space=smem, size = 0x4, offset = 0x4, fixed_abs, tag = 'smem constant byte address 0x4 - core index']
  #allocation1 [shape = 'u32[144,128]{1,0:T(1,128)}', space=vmem, size = 0x12000, scoped, tag = 'internal scratch']
  %s0 = inlined_call_operand.hbm [shape: f32[8,256], index: 0, kind: input, shape index: {}, may-alias: {0,1}]
  %s1 = inlined_call_operand.hbm [shape: f32[8,256], index: 1, kind: output, shape index: {}, may-alias: {0,1}]
  %s2 = sld [smem:[#allocation0]]
  $region18: #{tpu_custom_call.1} parent=0
    _
  %s4 = ssub.s32 1, %s2
  %s5 = scalar_select 0, %s4, %s2
  $region1: #{tpu_custom_call.1} parent=0
    #allocation2 [shape = 'u8[8192]{0}', space=vmem, size = 0x2000, scoped, tag = 'input window, operand 0, single buffered']
    #allocation3 [shape = 's32[1]{0}', space=sflag, size = 0x4, scoped, tag = 'scoped memory for tpu_custom_call.1']
    #allocation4 [shape = 's32[1]{0}', space=sflag, size = 0x4, scoped, tag = 'scoped memory for tpu_custom_call.1']
    #allocation5 [shape = 'u8[8192]{0}', space=vmem, size = 0x2000, scoped, tag = 'output window, operand 0, single buffered']
    %6 = vsyncpa [#allocation3], 0
    %7 = vsyncpa [#allocation4], 0
    // Predicated region
    $region2: #{tpu_custom_call.1} parent=1 // pred_check
      _
    $region3: #{tpu_custom_call.1} parent=1 // pred_check_branch
      %9 = sbr.rel (0) target = $region5
    $region4: #{tpu_custom_call.1} parent=1 // pred_region
      %s11 = ssub.s32 256, 256
      %12 = vsyncadd [#allocation3], %s11
      %s14 = sshll.u32 [#allocation2], 4
      %s15 = int_to_ptr.vmem [resolvable:$true] %s14
      %17 = dma.hbm_to_vmem [thread:$0]  %s0, 256, %s15, [#allocation3]
    $region5: #{tpu_custom_call.1} parent=1 // pred_fallthru
      _
    // Predicated region
    $region6: #{tpu_custom_call.1} parent=1 // pred_check
      _
    $region7: #{tpu_custom_call.1} parent=1 // pred_check_branch
      %19 = sbr.rel (0) target = $region9
    $region8: #{tpu_custom_call.1} parent=1 // pred_region
      %20 = dma.done [#allocation3], 256
    $region9: #{tpu_custom_call.1} parent=1 // pred_fallthru
      _
    %v21 = vld [vmem:[#allocation2] sm:$0xff]
    %v22 = vld [vmem:[#allocation2 + $0x8] sm:$0xff]
    %23 = vst [vmem:[#allocation5] sm:$0xff] %v21
    %24 = vst [vmem:[#allocation5 + $0x8] sm:$0xff] %v22
    // Predicated region
    $region10: #{tpu_custom_call.1} parent=1 // pred_check
      _
    $region11: #{tpu_custom_call.1} parent=1 // pred_check_branch
      %26 = sbr.rel (0) target = $region13
    $region12: #{tpu_custom_call.1} parent=1 // pred_region
      %s28 = ssub.s32 256, 256
      %29 = vsyncadd [#allocation4], %s28
      %s31 = sshll.u32 [#allocation5], 4
      %s32 = int_to_ptr.vmem [resolvable:$true] %s31
      %34 = dma.vmem_to_hbm [thread:$0]  %s32, 256, %s1, [#allocation4]
    $region13: #{tpu_custom_call.1} parent=1 // pred_fallthru
      _
    // Predicated region
    $region14: #{tpu_custom_call.1} parent=1 // pred_check
      _
    $region15: #{tpu_custom_call.1} parent=1 // pred_check_branch
      %36 = sbr.rel (0) target = $region17
    $region16: #{tpu_custom_call.1} parent=1 // pred_region
      %37 = dma.done [#allocation4], 256
    $region17: #{tpu_custom_call.1} parent=1 // pred_fallthru
      _
    %38 = vsyncpa [#allocation3], 1
    %39 = vsyncpa [#allocation4], 1

</llo_original>
